<compile_context>
chip_gen: v5e
topology: v5e:2x2
jax: 0.10.0
libtpu: 0.0.40
codegen_flags: <defaults>
</compile_context>

<pallas_src>
import functools

import jax
import jax.numpy as jnp
from jax.experimental import pallas as pl
from jax.experimental.pallas import tpu as pltpu


def _round_up(x, m):
    return (x + m - 1) // m * m


def _pad2(a, rows, cols):
    return jnp.pad(a, ((0, rows - a.shape[0]), (0, cols - a.shape[1])))


def mv_gaussian_kernel(x_ref, w1_ref, b1_ref, w2_ref, b2_ref, wh_ref, bh_ref,
                       mean_ref, var_ref, *, np_pad):
    # x stays in its HBM dtype (f32); cast to bf16 in-register for the MXU.
    x = x_ref[...].astype(jnp.bfloat16)                              # [TB, Ki]

    # fc1 + relu (dropout1 with p=0.0 is the identity)
    h1 = jnp.dot(x, w1_ref[...], preferred_element_type=jnp.float32) + b1_ref[...]
    h1 = jnp.maximum(h1, 0.0).astype(jnp.bfloat16)                   # [TB, H]

    # fc2 + relu (dropout2 with p=0.0 is the identity)
    h2 = jnp.dot(h1, w2_ref[...], preferred_element_type=jnp.float32) + b2_ref[...]
    h2 = jnp.maximum(h2, 0.0).astype(jnp.bfloat16)                   # [TB, H]

    # fused mean||stdev head: single MXU pass, lane-dense stores
    s = jnp.dot(h2, wh_ref[...], preferred_element_type=jnp.float32) + bh_ref[...]
    mean = s[:, :np_pad]                                             # lane slice at 128-multiple
    std = s[:, np_pad:]
    mean_ref[...] = mean.astype(mean_ref.dtype)
    var_ref[...] = (std * std).astype(var_ref.dtype)

    # TODO(synk): softmax=True branch (F.softmax(fc2(x_1)).clamp(1e-9, 1-1e-9))
    # and dropout_prob > 0 (training-mode dropout) are not implemented; the
    # default-constructor path (softmax=False, p=0.0) is reproduced.


def prepare_params(params):
    """Pad + cast the weights once (outside the per-step hot path).

    params: dict with transposed weights w1[in,h], w2[h,h], wm[h,o], ws[h,o]
            and row-vector biases b1[1,h], b2[1,h], bm[1,o], bs[1,o].
    Returns a dict of padded bf16 weights / f32 biases plus Python-int metadata.
    """
    n_inputs, n_hidden = params["w1"].shape
    n_outputs = params["wm"].shape[1]
    h = _round_up(n_hidden, 128)
    npad = _round_up(n_outputs, 128)
    bf16, f32 = jnp.bfloat16, jnp.float32

    w1 = _pad2(params["w1"], n_inputs, h).astype(bf16)      # K kept at n_inputs (unpadded)
    b1 = _pad2(params["b1"].astype(f32), 1, h)
    w2 = _pad2(params["w2"], h, h).astype(bf16)
    b2 = _pad2(params["b2"].astype(f32), 1, h)
    wh = jnp.concatenate(
        [_pad2(params["wm"], h, npad), _pad2(params["ws"], h, npad)],
        axis=1).astype(bf16)                                 # [H, 2*Np]
    bh = jnp.concatenate(
        [_pad2(params["bm"].astype(f32), 1, npad),
         _pad2(params["bs"].astype(f32), 1, npad)], axis=1)  # [1, 2*Np]

    return dict(w1=w1, b1=b1, w2=w2, b2=b2, wh=wh, bh=bh,
                n_inputs=int(n_inputs), n_hidden=int(n_hidden),
                n_outputs=int(n_outputs), h_pad=int(h), np_pad=int(npad))


def mv_gaussian_forward(x, prepped, tile_b=1024):
    """x: [B, n_inputs] float32.  prepped: output of prepare_params()."""
    B, n_inputs = x.shape
    assert n_inputs == prepped["n_inputs"]
    h, npad, n_out = prepped["h_pad"], prepped["np_pad"], prepped["n_outputs"]

    if B <= tile_b:
        tb = B                       # single block == full batch dim (any size legal)
    else:
        tb = _round_up(min(tile_b, B), 8)   # multiple of 8; last block may be partial
    grid = (pl.cdiv(B, tb),)

    resident = lambda shape: pl.BlockSpec(shape, lambda i: (0,) * len(shape))
    f32 = jnp.float32

    mean_p, var_p = pl.pallas_call(
        functools.partial(mv_gaussian_kernel, np_pad=npad),
        out_shape=(
            jax.ShapeDtypeStruct((B, npad), f32),
            jax.ShapeDtypeStruct((B, npad), f32),
        ),
        grid=grid,
        in_specs=[
            pl.BlockSpec((tb, n_inputs), lambda i: (i, 0)),          # x tile (f32, unpadded)
            resident((n_inputs, h)), resident((1, h)),               # fc1
            resident((h, h)), resident((1, h)),                      # fc2
            resident((h, 2 * npad)), resident((1, 2 * npad)),        # fused heads
        ],
        out_specs=(
            pl.BlockSpec((tb, npad), lambda i: (i, 0)),
            pl.BlockSpec((tb, npad), lambda i: (i, 0)),
        ),
        compiler_params=pltpu.CompilerParams(
            dimension_semantics=("parallel",)),
    )(x, prepped["w1"], prepped["b1"], prepped["w2"], prepped["b2"],
      prepped["wh"], prepped["bh"])

    return mean_p[:, :n_out], var_p[:, :n_out]


def init_params(key, n_inputs, n_hidden, n_outputs):
    """Deterministic synthetic init (PyTorch-Linear-like uniform ranges)."""
    ks = jax.random.split(key, 8)

    def linear(kw, kb, fan_in, fan_out):
        bound = 1.0 / jnp.sqrt(fan_in)
        w = jax.random.uniform(kw, (fan_in, fan_out), jnp.float32, -bound, bound)
        b = jax.random.uniform(kb, (1, fan_out), jnp.float32, -bound, bound)
        return w, b

    w1, b1 = linear(ks[0], ks[1], n_inputs, n_hidden)
    w2, b2 = linear(ks[2], ks[3], n_hidden, n_hidden)
    wm, bm = linear(ks[4], ks[5], n_hidden, n_outputs)
    ws, bs = linear(ks[6], ks[7], n_hidden, n_outputs)
    return dict(w1=w1, b1=b1, w2=w2, b2=b2, wm=wm, bm=bm, ws=ws, bs=bs)


def reference_forward_f32(x, p):
    h1 = jnp.maximum(x @ p["w1"] + p["b1"], 0.0)
    h2 = jnp.maximum(h1 @ p["w2"] + p["b2"], 0.0)
    mean = h2 @ p["wm"] + p["bm"]
    s = h2 @ p["ws"] + p["bs"]
    return mean, s * s


def reference_forward_bf16(x, p):
    """Mirrors the kernel's bf16-weight / f32-accumulate arithmetic exactly."""
    bf = jnp.bfloat16
    h1 = jnp.dot(x.astype(bf), p["w1"].astype(bf),
                 preferred_element_type=jnp.float32) + p["b1"]
    h1 = jnp.maximum(h1, 0.0).astype(bf)
    h2 = jnp.dot(h1, p["w2"].astype(bf),
                 preferred_element_type=jnp.float32) + p["b2"]
    h2 = jnp.maximum(h2, 0.0).astype(bf)
    mean = jnp.dot(h2, p["wm"].astype(bf),
                   preferred_element_type=jnp.float32) + p["bm"]
    s = jnp.dot(h2, p["ws"].astype(bf),
                preferred_element_type=jnp.float32) + p["bs"]
    return mean, s * s


if __name__ == "__main__":
    key = jax.random.PRNGKey(0)
    kx, kp, kx2 = jax.random.split(key, 3)

    # --- test 1: toy module sizes (single grid step) ---
    B, n_inputs, n_hidden, n_outputs = 8, 32, 32, 16
    x = jax.random.normal(kx, (B, n_inputs), jnp.float32)
    params = init_params(kp, n_inputs, n_hidden, n_outputs)
    prepped = prepare_params(params)

    mean, var = mv_gaussian_forward(x, prepped)
    jax.block_until_ready((mean, var))
    assert mean.shape == (B, n_outputs) and var.shape == (B, n_outputs)

    mean_b, var_b = reference_forward_bf16(x, params)
    mean_f, var_f = reference_forward_f32(x, params)
    assert jnp.allclose(mean, mean_b, atol=2e-3, rtol=2e-3)
    assert jnp.allclose(var, var_b, atol=2e-3, rtol=2e-3)
    assert jnp.allclose(mean, mean_f, atol=5e-2, rtol=5e-2)
    assert jnp.allclose(var, var_f, atol=5e-2, rtol=5e-2)
    assert bool(jnp.all(var >= 0.0))

    # --- test 2: multi-step batch grid with a partial last block ---
    B2 = 200
    x2 = jax.random.normal(kx2, (B2, n_inputs), jnp.float32)
    mean2, var2 = mv_gaussian_forward(x2, prepped, tile_b=64)   # grid=(4,), last block partial
    jax.block_until_ready((mean2, var2))
    mean2_b, var2_b = reference_forward_bf16(x2, params)
    assert mean2.shape == (B2, n_outputs) and var2.shape == (B2, n_outputs)
    assert jnp.allclose(mean2, mean2_b, atol=2e-3, rtol=2e-3)
    assert jnp.allclose(var2, var2_b, atol=2e-3, rtol=2e-3)
    assert bool(jnp.all(var2 >= 0.0))

    print("KERNEL_OK")
</pallas_src>

<mosaic_0001>
module attributes {stable_mosaic.version = 11 : i64} {
  func.func @mv_gaussian_kernel(%arg0: i32, %arg1: memref<8x32xf32, #tpu.memory_space<vmem>>, %arg2: memref<32x128xbf16, #tpu.memory_space<vmem>>, %arg3: memref<1x128xf32, #tpu.memory_space<vmem>>, %arg4: memref<128x128xbf16, #tpu.memory_space<vmem>>, %arg5: memref<1x128xf32, #tpu.memory_space<vmem>>, %arg6: memref<128x256xbf16, #tpu.memory_space<vmem>>, %arg7: memref<1x256xf32, #tpu.memory_space<vmem>>, %arg8: memref<8x128xf32, #tpu.memory_space<vmem>>, %arg9: memref<8x128xf32, #tpu.memory_space<vmem>>) attributes {dimension_semantics = [#tpu.dimension_semantics<parallel>], iteration_bounds = array<i64: 1>, scalar_prefetch = 0 : i64, scratch_operands = 0 : i64, tpu.core_type = #tpu.core_type<tc>, window_params = [{transform_indices = @transform_0, window_bounds = array<i64: 8, 32>}, {pipeline_mode = #tpu.pipeline_mode<synchronous>, transform_indices = @transform_1, window_bounds = array<i64: 32, 128>}, {pipeline_mode = #tpu.pipeline_mode<synchronous>, transform_indices = @transform_2, window_bounds = array<i64: 1, 128>}, {pipeline_mode = #tpu.pipeline_mode<synchronous>, transform_indices = @transform_3, window_bounds = array<i64: 128, 128>}, {pipeline_mode = #tpu.pipeline_mode<synchronous>, transform_indices = @transform_4, window_bounds = array<i64: 1, 128>}, {pipeline_mode = #tpu.pipeline_mode<synchronous>, transform_indices = @transform_5, window_bounds = array<i64: 128, 256>}, {pipeline_mode = #tpu.pipeline_mode<synchronous>, transform_indices = @transform_6, window_bounds = array<i64: 1, 256>}, {transform_indices = @transform_7, window_bounds = array<i64: 8, 128>}, {transform_indices = @transform_8, window_bounds = array<i64: 8, 128>}]} {
    %c0 = arith.constant 0 : index
    %c0_0 = arith.constant 0 : index
    %0 = vector.load %arg1[%c0, %c0_0] : memref<8x32xf32, #tpu.memory_space<vmem>>, vector<8x32xf32>
    %1 = arith.truncf %0 : vector<8x32xf32> to vector<8x32xbf16>
    %c0_1 = arith.constant 0 : index
    %c0_2 = arith.constant 0 : index
    %2 = vector.load %arg2[%c0_1, %c0_2] : memref<32x128xbf16, #tpu.memory_space<vmem>>, vector<32x128xbf16>
    %cst = arith.constant dense<0.000000e+00> : vector<8x128xf32>
    %3 = tpu.matmul %1, %2, %cst {dimension_numbers = #tpu.dot_dimension_numbers<[1], [0], [0], [1], [0, 0, 1, 1], [], []>} : vector<8x32xbf16>, vector<32x128xbf16>, vector<8x128xf32> -> vector<8x128xf32>
    %c0_3 = arith.constant 0 : index
    %c0_4 = arith.constant 0 : index
    %4 = vector.load %arg3[%c0_3, %c0_4] : memref<1x128xf32, #tpu.memory_space<vmem>>, vector<1x128xf32>
    %5 = vector.broadcast %4 : vector<1x128xf32> to vector<8x128xf32>
    %6 = arith.addf %3, %5 : vector<8x128xf32>
    %cst_5 = arith.constant 0.000000e+00 : f32
    %7 = vector.broadcast %cst_5 : f32 to vector<8x128xf32>
    %8 = arith.maximumf %6, %7 : vector<8x128xf32>
    %9 = arith.truncf %8 : vector<8x128xf32> to vector<8x128xbf16>
    %c0_6 = arith.constant 0 : index
    %c0_7 = arith.constant 0 : index
    %10 = vector.load %arg4[%c0_6, %c0_7] : memref<128x128xbf16, #tpu.memory_space<vmem>>, vector<128x128xbf16>
    %cst_8 = arith.constant dense<0.000000e+00> : vector<8x128xf32>
    %11 = tpu.matmul %9, %10, %cst_8 {dimension_numbers = #tpu.dot_dimension_numbers<[1], [0], [0], [1], [0, 0, 1, 1], [], []>} : vector<8x128xbf16>, vector<128x128xbf16>, vector<8x128xf32> -> vector<8x128xf32>
    %c0_9 = arith.constant 0 : index
    %c0_10 = arith.constant 0 : index
    %12 = vector.load %arg5[%c0_9, %c0_10] : memref<1x128xf32, #tpu.memory_space<vmem>>, vector<1x128xf32>
    %13 = vector.broadcast %12 : vector<1x128xf32> to vector<8x128xf32>
    %14 = arith.addf %11, %13 : vector<8x128xf32>
    %cst_11 = arith.constant 0.000000e+00 : f32
    %15 = vector.broadcast %cst_11 : f32 to vector<8x128xf32>
    %16 = arith.maximumf %14, %15 : vector<8x128xf32>
    %17 = arith.truncf %16 : vector<8x128xf32> to vector<8x128xbf16>
    %c0_12 = arith.constant 0 : index
    %c0_13 = arith.constant 0 : index
    %18 = vector.load %arg6[%c0_12, %c0_13] : memref<128x256xbf16, #tpu.memory_space<vmem>>, vector<128x256xbf16>
    %cst_14 = arith.constant dense<0.000000e+00> : vector<8x256xf32>
    %19 = tpu.matmul %17, %18, %cst_14 {dimension_numbers = #tpu.dot_dimension_numbers<[1], [0], [0], [1], [0, 0, 1, 1], [], []>} : vector<8x128xbf16>, vector<128x256xbf16>, vector<8x256xf32> -> vector<8x256xf32>
    %c0_15 = arith.constant 0 : index
    %c0_16 = arith.constant 0 : index
    %20 = vector.load %arg7[%c0_15, %c0_16] : memref<1x256xf32, #tpu.memory_space<vmem>>, vector<1x256xf32>
    %21 = vector.broadcast %20 : vector<1x256xf32> to vector<8x256xf32>
    %22 = arith.addf %19, %21 : vector<8x256xf32>
    %23 = vector.extract_strided_slice %22 {offsets = [0, 0], sizes = [8, 128], strides = [1, 1]} : vector<8x256xf32> to vector<8x128xf32>
    %24 = vector.extract_strided_slice %22 {offsets = [0, 128], sizes = [8, 128], strides = [1, 1]} : vector<8x256xf32> to vector<8x128xf32>
    %c0_17 = arith.constant 0 : index
    %c0_18 = arith.constant 0 : index
    %25 = vector.load %arg8[%c0_17, %c0_18] : memref<8x128xf32, #tpu.memory_space<vmem>>, vector<8x128xf32>
    tpu.vector_store %arg8[%c0_17, %c0_18], %23 {strides = array<i32>} : memref<8x128xf32, #tpu.memory_space<vmem>>, vector<8x128xf32>,
    %26 = arith.mulf %24, %24 : vector<8x128xf32>
    %c0_19 = arith.constant 0 : index
    %c0_20 = arith.constant 0 : index
    %27 = vector.load %arg9[%c0_19, %c0_20] : memref<8x128xf32, #tpu.memory_space<vmem>>, vector<8x128xf32>
    tpu.vector_store %arg9[%c0_19, %c0_20], %26 {strides = array<i32>} : memref<8x128xf32, #tpu.memory_space<vmem>>, vector<8x128xf32>,
    return
  }
  func.func @transform_0(%arg0: i32) -> (i32, i32) {
    %c0_i32 = arith.constant 0 : i32
    %c0_i32_0 = arith.constant 0 : i32
    return %arg0, %c0_i32 : i32, i32
  }
  func.func @transform_1(%arg0: i32) -> (i32, i32) {
    %c0_i32 = arith.constant 0 : i32
    %c0_i32_0 = arith.constant 0 : i32
    %c0_i32_1 = arith.constant 0 : i32
    return %c0_i32, %c0_i32_0 : i32, i32
  }
  func.func @transform_2(%arg0: i32) -> (i32, i32) {
    %c0_i32 = arith.constant 0 : i32
    %c0_i32_0 = arith.constant 0 : i32
    %c0_i32_1 = arith.constant 0 : i32
    return %c0_i32, %c0_i32_0 : i32, i32
  }
  func.func @transform_3(%arg0: i32) -> (i32, i32) {
    %c0_i32 = arith.constant 0 : i32
    %c0_i32_0 = arith.constant 0 : i32
    %c0_i32_1 = arith.constant 0 : i32
    return %c0_i32, %c0_i32_0 : i32, i32
  }
  func.func @transform_4(%arg0: i32) -> (i32, i32) {
    %c0_i32 = arith.constant 0 : i32
    %c0_i32_0 = arith.constant 0 : i32
    %c0_i32_1 = arith.constant 0 : i32
    return %c0_i32, %c0_i32_0 : i32, i32
  }
  func.func @transform_5(%arg0: i32) -> (i32, i32) {
    %c0_i32 = arith.constant 0 : i32
    %c0_i32_0 = arith.constant 0 : i32
    %c0_i32_1 = arith.constant 0 : i32
    return %c0_i32, %c0_i32_0 : i32, i32
  }
  func.func @transform_6(%arg0: i32) -> (i32, i32) {
    %c0_i32 = arith.constant 0 : i32
    %c0_i32_0 = arith.constant 0 : i32
    %c0_i32_1 = arith.constant 0 : i32
    return %c0_i32, %c0_i32_0 : i32, i32
  }
  func.func @transform_7(%arg0: i32) -> (i32, i32) {
    %c0_i32 = arith.constant 0 : i32
    %c0_i32_0 = arith.constant 0 : i32
    return %arg0, %c0_i32 : i32, i32
  }
  func.func @transform_8(%arg0: i32) -> (i32, i32) {
    %c0_i32 = arith.constant 0 : i32
    %c0_i32_0 = arith.constant 0 : i32
    return %arg0, %c0_i32 : i32, i32
  }
}

</mosaic_0001>

<llo_original>
// kernel: tpu_custom_call.1
$region0: #{tpu_custom_call.1}
  #allocation0 [shape = 'u32[]', space=smem, size = 0x4, offset = 0x4, fixed_abs, tag = 'smem constant byte address 0x4 - core index']
  #allocation1 [shape = 'u32[72,128]{1,0:T(1,128)}', space=vmem, size = 0x9000, scoped, tag = 'internal scratch']
  %s0 = inlined_call_operand.hbm [shape: f32[8,32], index: 0, kind: input, shape index: {}]
  %s1 = inlined_call_operand.hbm [shape: bf16[32,128], index: 1, kind: input, shape index: {}]
  %s2 = inlined_call_operand.vmem [shape: f32[1,128], index: 2, kind: input, shape index: {}]
  %s3 = inlined_call_operand.hbm [shape: bf16[128,128], index: 3, kind: input, shape index: {}]
  %s4 = inlined_call_operand.hbm [shape: f32[1,128], index: 4, kind: input, shape index: {}]
  %s5 = inlined_call_operand.hbm [shape: bf16[128,256], index: 5, kind: input, shape index: {}]
  %s6 = inlined_call_operand.vmem [shape: f32[1,256], index: 6, kind: input, shape index: {}]
  %s7 = inlined_call_operand.hbm [shape: f32[8,128], index: 7, kind: output, shape index: {0}]
  %s8 = inlined_call_operand.hbm [shape: f32[8,128], index: 8, kind: output, shape index: {1}]
  %9 = xla_tuple %s7, %s8
  %s10 = sld [smem:[#allocation0]]
  $region66: #{tpu_custom_call.1} parent=0
    _
  %s12 = ssub.s32 1, %s10
  %s13 = scalar_select 0, %s12, %s10
  $region1: #{tpu_custom_call.1} parent=0
    #allocation2 [shape = 'u8[4096]{0}', space=vmem, size = 0x1000, scoped, tag = 'input window, operand 0, single buffered']
    #allocation3 [shape = 's32[1]{0}', space=sflag, size = 0x4, scoped, tag = 'scoped memory for tpu_custom_call.1']
    #allocation4 [shape = 's32[1]{0}', space=sflag, size = 0x4, scoped, tag = 'scoped memory for tpu_custom_call.1']
    #allocation5 [shape = 'u8[8192]{0}', space=vmem, size = 0x2000, scoped, tag = 'input window, operand 1, single buffered']
    #allocation6 [shape = 's32[1]{0}', space=sflag, size = 0x4, scoped, tag = 'scoped memory for tpu_custom_call.1']
    #allocation7 [shape = 'u8[32768]{0}', space=vmem, size = 0x8000, scoped, tag = 'input window, operand 3, single buffered']
    #allocation8 [shape = 'u8[512]{0}', space=vmem, size = 0x400, scoped, tag = 'input window, operand 4, single buffered']
    #allocation9 [shape = 's32[1]{0}', space=sflag, size = 0x4, scoped, tag = 'scoped memory for tpu_custom_call.1']
    #allocation10 [shape = 'u8[65536]{0}', space=vmem, size = 0x10000, scoped, tag = 'input window, operand 5, single buffered']
    #allocation11 [shape = 'u8[4096]{0}', space=vmem, size = 0x1000, scoped, tag = 'output window, operand 0, single buffered']
    #allocation12 [shape = 'u8[4096]{0}', space=vmem, size = 0x1000, scoped, tag = 'output window, operand 1, single buffered']
    #allocation13 [shape = 's32[1]{0}', space=sflag, size = 0x4, scoped, tag = 'scoped memory for tpu_custom_call.1']
    %14 = vsyncpa [#allocation3], 0
    %15 = vsyncpa [#allocation6], 0
    %16 = vsyncpa [#allocation9], 0
    %17 = vsyncpa [#allocation4], 0
    %18 = vsyncpa [#allocation13], 0
    // Predicated region
    $region2: #{tpu_custom_call.1} parent=1 // pred_check
      _
    $region3: #{tpu_custom_call.1} parent=1 // pred_check_branch
      %20 = sbr.rel (0) target = $region5
    $region4: #{tpu_custom_call.1} parent=1 // pred_region
      %22 = vsyncadd [#allocation3], 0
      %s24 = sshll.u32 %s0, 4
      %s25 = int_to_ptr.hbm [resolvable:$true] %s24
      %s26 = sshll.u32 [#allocation2], 4
      %s27 = int_to_ptr.vmem [resolvable:$true] %s26
      %29 = dma.hbm_to_vmem [thread:$0]  %s25, 128, %s27, [#allocation3]
    $region5: #{tpu_custom_call.1} parent=1 // pred_fallthru
      _
    // Predicated region
    $region6: #{tpu_custom_call.1} parent=1 // pred_check
      _
    $region7: #{tpu_custom_call.1} parent=1 // pred_check_branch
      %31 = sbr.rel (0) target = $region9
    $region8: #{tpu_custom_call.1} parent=1 // pred_region
      %33 = vsyncadd [#allocation6], 0
      %s34 = sshll.u32 %s1, 4
      %s35 = int_to_ptr.hbm [resolvable:$true] %s34
      %s36 = sshll.u32 [#allocation5], 4
      %s37 = int_to_ptr.vmem [resolvable:$true] %s36
      %42 = dma.hbm_to_vmem [thread:$0]  %s35, 256, %s37, [#allocation6], 64, 64, 4
    $region9: #{tpu_custom_call.1} parent=1 // pred_fallthru
      _
    // Predicated region
    $region10: #{tpu_custom_call.1} parent=1 // pred_check
      _
    $region11: #{tpu_custom_call.1} parent=1 // pred_check_branch
      %44 = sbr.rel (0) target = $region13
    $region12: #{tpu_custom_call.1} parent=1 // pred_region
      _
    $region13: #{tpu_custom_call.1} parent=1 // pred_fallthru
      _
    // Predicated region
    $region14: #{tpu_custom_call.1} parent=1 // pred_check
      _
    $region15: #{tpu_custom_call.1} parent=1 // pred_check_branch
      %46 = sbr.rel (0) target = $region17
    $region16: #{tpu_custom_call.1} parent=1 // pred_region
      %48 = vsyncadd [#allocation6], 0
      %s49 = sshll.u32 %s3, 4
      %s50 = int_to_ptr.hbm [resolvable:$true] %s49
      %s51 = sshll.u32 [#allocation7], 4
      %s52 = int_to_ptr.vmem [resolvable:$true] %s51
      %57 = dma.hbm_to_vmem [thread:$0]  %s50, 1024, %s52, [#allocation6], 64, 64, 4
    $region17: #{tpu_custom_call.1} parent=1 // pred_fallthru
      _
    // Predicated region
    $region18: #{tpu_custom_call.1} parent=1 // pred_check
      _
    $region19: #{tpu_custom_call.1} parent=1 // pred_check_branch
      %59 = sbr.rel (0) target = $region21
    $region20: #{tpu_custom_call.1} parent=1 // pred_region
      %61 = vsyncadd [#allocation9], 0
      %s63 = sshll.u32 %s4, 4
      %s64 = int_to_ptr.hbm [resolvable:$true] %s63
      %s65 = sshll.u32 [#allocation8], 4
      %s66 = int_to_ptr.vmem [resolvable:$true] %s65
      %68 = dma.hbm_to_vmem [thread:$0]  %s64, 16, %s66, [#allocation9]
    $region21: #{tpu_custom_call.1} parent=1 // pred_fallthru
      _
    // Predicated region
    $region22: #{tpu_custom_call.1} parent=1 // pred_check
      _
    $region23: #{tpu_custom_call.1} parent=1 // pred_check_branch
      %70 = sbr.rel (0) target = $region25
    $region24: #{tpu_custom_call.1} parent=1 // pred_region
      %72 = vsyncadd [#allocation9], 0
      %s73 = sshll.u32 %s5, 4
      %s74 = int_to_ptr.hbm [resolvable:$true] %s73
      %s75 = sshll.u32 [#allocation10], 4
      %s76 = int_to_ptr.vmem [resolvable:$true] %s75
      %81 = dma.hbm_to_vmem [thread:$0]  %s74, 2048, %s76, [#allocation9], 128, 128, 8
    $region25: #{tpu_custom_call.1} parent=1 // pred_fallthru
      _
    // Predicated region
    $region26: #{tpu_custom_call.1} parent=1 // pred_check
      _
    $region27: #{tpu_custom_call.1} parent=1 // pred_check_branch
      %83 = sbr.rel (0) target = $region29
    $region28: #{tpu_custom_call.1} parent=1 // pred_region
      _
    $region29: #{tpu_custom_call.1} parent=1 // pred_fallthru
      _
    // Predicated region
    $region30: #{tpu_custom_call.1} parent=1 // pred_check
      _
    $region31: #{tpu_custom_call.1} parent=1 // pred_check_branch
      %85 = sbr.rel (0) target = $region33
    $region32: #{tpu_custom_call.1} parent=1 // pred_region
      %87 = dma.done [#allocation3], 128
    $region33: #{tpu_custom_call.1} parent=1 // pred_fallthru
      _
    // Predicated region
    $region34: #{tpu_custom_call.1} parent=1 // pred_check
      _
    $region35: #{tpu_custom_call.1} parent=1 // pred_check_branch
      %89 = sbr.rel (0) target = $region37
    $region36: #{tpu_custom_call.1} parent=1 // pred_region
      %91 = dma.done [#allocation6], 256
    $region37: #{tpu_custom_call.1} parent=1 // pred_fallthru
      _
    // Predicated region
    $region38: #{tpu_custom_call.1} parent=1 // pred_check
      _
    $region39: #{tpu_custom_call.1} parent=1 // pred_check_branch
      %93 = sbr.rel (0) target = $region41
    $region40: #{tpu_custom_call.1} parent=1 // pred_region
      %95 = dma.done [#allocation6], 1024
    $region41: #{tpu_custom_call.1} parent=1 // pred_fallthru
      _
    // Predicated region
    $region42: #{tpu_custom_call.1} parent=1 // pred_check
      _
    $region43: #{tpu_custom_call.1} parent=1 // pred_check_branch
      %97 = sbr.rel (0) target = $region45
    $region44: #{tpu_custom_call.1} parent=1 // pred_region
      %99 = dma.done [#allocation9], 16
    $region45: #{tpu_custom_call.1} parent=1 // pred_fallthru
      _
    // Predicated region
    $region46: #{tpu_custom_call.1} parent=1 // pred_check
      _
    $region47: #{tpu_custom_call.1} parent=1 // pred_check_branch
      %101 = sbr.rel (0) target = $region49
    $region48: #{tpu_custom_call.1} parent=1 // pred_region
      %103 = dma.done [#allocation9], 2048
    $region49: #{tpu_custom_call.1} parent=1 // pred_fallthru
      _
    %v105 = vld [vmem:[#allocation2] sm:$0xff]
    %v106 = vpack.c.bf16 %v105, %v105
    %v107 = vld [vmem:[#allocation5] sm:$0xf]
    %v108 = vld [vmem:[#allocation5 + $0x4] sm:$0xf]
    %v109 = vld [vmem:[#allocation5 + $0x8] sm:$0xf]
    %v110 = vld [vmem:[#allocation5 + $0xc] sm:$0xf]
    %v111 = vld [vmem:[%s2] sm:$0x1]
    %v113 = vperm.slane %v111, 0
    %v119 = vunpack.c.l.b16 %v107
    %v120 = vunpack.c.l.b16 %v108
    %v121 = vunpack.c.l.b16 %v109
    %v122 = vunpack.c.l.b16 %v110
    %v123 = vpack.c.b16 %v120, %v119
    %v124 = vpack.c.b16 %v122, %v121
    %vm127 = vcmask 261120
    %v129 = vsel %vm127, %v106, 0
    %131 = vmatpush.bf16.msra.mxu0 0
    %132 = vmatpush.bf16.msra.mxu0 0
    %133 = vmatpush.bf16.msra.mxu0 0
    %134 = vmatpush.bf16.msra.mxu0 0
    %135 = vmatpush.bf16.msra.mxu0 0
    %136 = vmatpush.bf16.msra.mxu0 0
    %137 = vmatpush.bf16.msra.mxu0 %v124
    %138 = vmatpush.bf16.msra.mxu0 %v123
    %139 = vmatmul.bf16.gmra.mxu0 %v129
    %v140 = vpop.f32.mrf.mxu0
    %v141 = vadd.f32 %v113, %v140
    %v142 = vpop.f32.mrf.mxu0
    %143 = vdwg.mxu0
    %v144 = vmax.f32 %v141, 0.0
    %v145 = vpack.c.bf16 %v144, %v144
    %v146 = vld [vmem:[#allocation7] sm:$0xf]
    %v147 = vld [vmem:[#allocation7 + $0x4] sm:$0xf]
    %v148 = vld [vmem:[#allocation7 + $0x8] sm:$0xf]
    %v149 = vld [vmem:[#allocation7 + $0xc] sm:$0xf]
    %v150 = vld [vmem:[#allocation7 + $0x10] sm:$0xf]
    %v151 = vld [vmem:[#allocation7 + $0x14] sm:$0xf]
    %v152 = vld [vmem:[#allocation7 + $0x18] sm:$0xf]
    %v153 = vld [vmem:[#allocation7 + $0x1c] sm:$0xf]
    %v154 = vld [vmem:[#allocation7 + $0x20] sm:$0xf]
    %v155 = vld [vmem:[#allocation7 + $0x24] sm:$0xf]
    %v156 = vld [vmem:[#allocation7 + $0x28] sm:$0xf]
    %v157 = vld [vmem:[#allocation7 + $0x2c] sm:$0xf]
    %v158 = vld [vmem:[#allocation7 + $0x30] sm:$0xf]
    %v159 = vld [vmem:[#allocation7 + $0x34] sm:$0xf]
    %v160 = vld [vmem:[#allocation7 + $0x38] sm:$0xf]
    %v161 = vld [vmem:[#allocation7 + $0x3c] sm:$0xf]
    %v162 = vld [vmem:[#allocation8] sm:$0x1]
    %v164 = vperm.slane %v162, 0
    %v182 = vunpack.c.l.b16 %v146
    %v183 = vunpack.c.l.b16 %v147
    %v184 = vunpack.c.l.b16 %v148
    %v185 = vunpack.c.l.b16 %v149
    %v186 = vunpack.c.l.b16 %v150
    %v187 = vunpack.c.l.b16 %v151
    %v188 = vunpack.c.l.b16 %v152
    %v189 = vunpack.c.l.b16 %v153
    %v190 = vunpack.c.l.b16 %v154
    %v191 = vunpack.c.l.b16 %v155
    %v192 = vunpack.c.l.b16 %v156
    %v193 = vunpack.c.l.b16 %v157
    %v194 = vunpack.c.l.b16 %v158
    %v195 = vunpack.c.l.b16 %v159
    %v196 = vunpack.c.l.b16 %v160
    %v197 = vunpack.c.l.b16 %v161
    %v198 = vpack.c.b16 %v183, %v182
    %v199 = vpack.c.b16 %v185, %v184
    %v200 = vpack.c.b16 %v187, %v186
    %v201 = vpack.c.b16 %v189, %v188
    %v202 = vpack.c.b16 %v191, %v190
    %v203 = vpack.c.b16 %v193, %v192
    %v204 = vpack.c.b16 %v195, %v194
    %v205 = vpack.c.b16 %v197, %v196
    %214 = vmatpush.bf16.msra.mxu0 %v205
    %215 = vmatpush.bf16.msra.mxu0 %v204
    %216 = vmatpush.bf16.msra.mxu0 %v203
    %217 = vmatpush.bf16.msra.mxu0 %v202
    %218 = vmatpush.bf16.msra.mxu0 %v201
    %219 = vmatpush.bf16.msra.mxu0 %v200
    %220 = vmatpush.bf16.msra.mxu0 %v199
    %221 = vmatpush.bf16.msra.mxu0 %v198
    %222 = vmatmul.bf16.gmra.mxu0 %v145
    %v223 = vpop.f32.mrf.mxu0
    %v224 = vadd.f32 %v164, %v223
    %v225 = vpop.f32.mrf.mxu0
    %226 = vdwg.mxu0
    %v227 = vmax.f32 %v224, 0.0
    %v228 = vpack.c.bf16 %v227, %v227
    %v229 = vld [vmem:[#allocation10] sm:$0xff]
    %v230 = vld [vmem:[#allocation10 + $0x8] sm:$0xff]
    %v231 = vld [vmem:[#allocation10 + $0x10] sm:$0xff]
    %v232 = vld [vmem:[#allocation10 + $0x18] sm:$0xff]
    %v233 = vld [vmem:[#allocation10 + $0x20] sm:$0xff]
    %v234 = vld [vmem:[#allocation10 + $0x28] sm:$0xff]
    %v235 = vld [vmem:[#allocation10 + $0x30] sm:$0xff]
    %v236 = vld [vmem:[#allocation10 + $0x38] sm:$0xff]
    %v237 = vld [vmem:[#allocation10 + $0x40] sm:$0xff]
    %v238 = vld [vmem:[#allocation10 + $0x48] sm:$0xff]
    %v239 = vld [vmem:[#allocation10 + $0x50] sm:$0xff]
    %v240 = vld [vmem:[#allocation10 + $0x58] sm:$0xff]
    %v241 = vld [vmem:[#allocation10 + $0x60] sm:$0xff]
    %v242 = vld [vmem:[#allocation10 + $0x68] sm:$0xff]
    %v243 = vld [vmem:[#allocation10 + $0x70] sm:$0xff]
    %v244 = vld [vmem:[#allocation10 + $0x78] sm:$0xff]
    %v245 = vld [vmem:[%s6] sm:$0x3]
    %v247 = vperm.slane %v245, 0
    %v248 = vperm.slane %v245, 1
    %v267 = vunpack.c.l.b16 %v229
    %v268 = vunpack.c.h.b16 %v229
    %v269 = vunpack.c.l.b16 %v230
    %v270 = vunpack.c.h.b16 %v230
    %v271 = vunpack.c.l.b16 %v231
    %v272 = vunpack.c.h.b16 %v231
    %v273 = vunpack.c.l.b16 %v232
    %v274 = vunpack.c.h.b16 %v232
    %v275 = vunpack.c.l.b16 %v233
    %v276 = vunpack.c.h.b16 %v233
    %v277 = vunpack.c.l.b16 %v234
    %v278 = vunpack.c.h.b16 %v234
    %v279 = vunpack.c.l.b16 %v235
    %v280 = vunpack.c.h.b16 %v235
    %v281 = vunpack.c.l.b16 %v236
    %v282 = vunpack.c.h.b16 %v236
    %v283 = vunpack.c.l.b16 %v237
    %v284 = vunpack.c.h.b16 %v237
    %v285 = vunpack.c.l.b16 %v238
    %v286 = vunpack.c.h.b16 %v238
    %v287 = vunpack.c.l.b16 %v239
    %v288 = vunpack.c.h.b16 %v239
    %v289 = vunpack.c.l.b16 %v240
    %v290 = vunpack.c.h.b16 %v240
    %v291 = vunpack.c.l.b16 %v241
    %v292 = vunpack.c.h.b16 %v241
    %v293 = vunpack.c.l.b16 %v242
    %v294 = vunpack.c.h.b16 %v242
    %v295 = vunpack.c.l.b16 %v243
    %v296 = vunpack.c.h.b16 %v243
    %v297 = vunpack.c.l.b16 %v244
    %v298 = vunpack.c.h.b16 %v244
    %v299 = vpack.c.b16 %v269, %v267
    %v300 = vpack.c.b16 %v270, %v268
    %v301 = vpack.c.b16 %v273, %v271
    %v302 = vpack.c.b16 %v274, %v272
    %v303 = vpack.c.b16 %v277, %v275
    %v304 = vpack.c.b16 %v278, %v276
    %v305 = vpack.c.b16 %v281, %v279
    %v306 = vpack.c.b16 %v282, %v280
    %v307 = vpack.c.b16 %v285, %v283
    %v308 = vpack.c.b16 %v286, %v284
    %v309 = vpack.c.b16 %v289, %v287
    %v310 = vpack.c.b16 %v290, %v288
    %v311 = vpack.c.b16 %v293, %v291
    %v312 = vpack.c.b16 %v294, %v292
    %v313 = vpack.c.b16 %v297, %v295
    %v314 = vpack.c.b16 %v298, %v296
    %331 = vmatpush.bf16.msra.mxu0 %v313
    %332 = vmatpush.bf16.msra.mxu0 %v311
    %333 = vmatpush.bf16.msra.mxu0 %v309
    %334 = vmatpush.bf16.msra.mxu0 %v307
    %335 = vmatpush.bf16.msra.mxu0 %v305
    %336 = vmatpush.bf16.msra.mxu0 %v303
    %337 = vmatpush.bf16.msra.mxu0 %v301
    %338 = vmatpush.bf16.msra.mxu0 %v299
    %339 = vmatmul.bf16.gmra.mxu0 %v228
    %v340 = vpop.f32.mrf.mxu0
    %v341 = vadd.f32 %v247, %v340
    %v342 = vpop.f32.mrf.mxu0
    %343 = vdwg.mxu0
    %344 = vmatpush.bf16.msra.mxu0 %v314
    %345 = vmatpush.bf16.msra.mxu0 %v312
    %346 = vmatpush.bf16.msra.mxu0 %v310
    %347 = vmatpush.bf16.msra.mxu0 %v308
    %348 = vmatpush.bf16.msra.mxu0 %v306
    %349 = vmatpush.bf16.msra.mxu0 %v304
    %350 = vmatpush.bf16.msra.mxu0 %v302
    %351 = vmatpush.bf16.msra.mxu0 %v300
    %352 = vmatmul.bf16.gmra.mxu0 %v228
    %v353 = vpop.f32.mrf.mxu0
    %v354 = vadd.f32 %v248, %v353
    %v355 = vpop.f32.mrf.mxu0
    %356 = vdwg.mxu0
    %357 = vst [vmem:[#allocation11] sm:$0xff] %v341
    %v358 = vmul.f32 %v354, %v354
    %359 = vst [vmem:[#allocation12] sm:$0xff] %v358
    // Predicated region
    $region50: #{tpu_custom_call.1} parent=1 // pred_check
      _
    $region51: #{tpu_custom_call.1} parent=1 // pred_check_branch
      %361 = sbr.rel (0) target = $region53
    $region52: #{tpu_custom_call.1} parent=1 // pred_region
      %363 = vsyncadd [#allocation4], 0
      %s365 = sshll.u32 [#allocation11], 4
      %s366 = int_to_ptr.vmem [resolvable:$true] %s365
      %s367 = sshll.u32 %s7, 4
      %s368 = int_to_ptr.hbm [resolvable:$true] %s367
      %370 = dma.vmem_to_hbm [thread:$0]  %s366, 128, %s368, [#allocation4]
    $region53: #{tpu_custom_call.1} parent=1 // pred_fallthru
      _
    // Predicated region
    $region54: #{tpu_custom_call.1} parent=1 // pred_check
      _
    $region55: #{tpu_custom_call.1} parent=1 // pred_check_branch
      %372 = sbr.rel (0) target = $region57
    $region56: #{tpu_custom_call.1} parent=1 // pred_region
      %374 = vsyncadd [#allocation13], 0
      %s376 = sshll.u32 [#allocation12], 4
      %s377 = int_to_ptr.vmem [resolvable:$true] %s376
      %s378 = sshll.u32 %s8, 4
      %s379 = int_to_ptr.hbm [resolvable:$true] %s378
      %381 = dma.vmem_to_hbm [thread:$0]  %s377, 128, %s379, [#allocation13]
    $region57: #{tpu_custom_call.1} parent=1 // pred_fallthru
      _
    // Predicated region
    $region58: #{tpu_custom_call.1} parent=1 // pred_check
      _
    $region59: #{tpu_custom_call.1} parent=1 // pred_check_branch
      %383 = sbr.rel (0) target = $region61
    $region60: #{tpu_custom_call.1} parent=1 // pred_region
      %385 = dma.done [#allocation4], 128
    $region61: #{tpu_custom_call.1} parent=1 // pred_fallthru
      _
    // Predicated region
    $region62: #{tpu_custom_call.1} parent=1 // pred_check
      _
    $region63: #{tpu_custom_call.1} parent=1 // pred_check_branch
      %387 = sbr.rel (0) target = $region65
    $region64: #{tpu_custom_call.1} parent=1 // pred_region
      %389 = dma.done [#allocation13], 128
    $region65: #{tpu_custom_call.1} parent=1 // pred_fallthru
      _
    %390 = vsyncpa [#allocation3], 1
    %391 = vsyncpa [#allocation6], 1
    %392 = vsyncpa [#allocation9], 1
    %393 = vsyncpa [#allocation4], 1
    %394 = vsyncpa [#allocation13], 1

</llo_original>
